<compile_context>
chip_gen: v5e
topology: v5e:2x2
jax: 0.10.0
libtpu: 0.0.40
codegen_flags: <defaults>
</compile_context>

<pallas_src>
import functools

import jax
import jax.numpy as jnp
from jax.experimental import pallas as pl
from jax.experimental.pallas import tpu as pltpu


def _mlp_kernel(x_ref, w1_ref, b1_ref, w2_ref, b2_ref, w3_ref, b3_ref,
                w4_ref, b4_ref, o_ref):
    # x arrives f32 straight from HBM (no wrapper-side cast/pad pass); the
    # f32 -> bf16 cast is VPU work hidden under the x DMA.
    x = x_ref[...].astype(w1_ref.dtype)

    h = jnp.dot(x, w1_ref[...], preferred_element_type=jnp.float32) + b1_ref[...]
    h = jnp.maximum(h, 0.0)
    # Dropout(p=0.2): eval-mode identity.
    # TODO(synk): training-mode stochastic dropout not emulated.

    h = jnp.dot(h.astype(w2_ref.dtype), w2_ref[...],
                preferred_element_type=jnp.float32) + b2_ref[...]
    h = jnp.maximum(h, 0.0)

    h = jnp.dot(h.astype(w3_ref.dtype), w3_ref[...],
                preferred_element_type=jnp.float32) + b3_ref[...]
    h = jnp.maximum(h, 0.0)                                   # (bt, 32) f32

    # Final Linear(32, 1) as an NT matmul: (1,32) x (bt,32)^T -> (1, bt).
    # The result is born lane-dense (batch along lanes) -> unmasked vst, no
    # sublane->lane relayout of the output.
    # NOTE: if the bundle dump shows a large vxpose of h on the critical path
    # at bt >= 4k, consider a lane-reduce formulation; normally the XLU slot
    # makes this free.
    y = jax.lax.dot_general(
        w4_ref[...], h.astype(w4_ref.dtype),
        dimension_numbers=(((1,), (1,)), ((), ())),
        preferred_element_type=jnp.float32)                   # (1, bt)
    o_ref[...] = (y + b4_ref[...]).astype(o_ref.dtype)


def _round_up(x, m):
    return ((x + m - 1) // m) * m


def _vmem_capacity_bytes():
    """Per-core VMEM capacity; conservative (v7x) fallback if query fails."""
    try:
        return int(pltpu.get_tpu_info().vmem_capacity_bytes)
    except Exception:
        return 64 * 1024 * 1024


def _pick_batch_tile(batch, d_in, vmem_cap):
    """Batch tile: big (up to 8192 rows) to amortize the ~0.35us/step cost,
    lane-aligned (multiple of 128) when B >= 128, >= 2 tiles for B >= 256 so
    v7x megacore can shard them, preferring an even tile count."""
    if batch < 128:
        return _round_up(max(batch, 8), 8)       # single small tile

    # Guard the double-buffered f32 x tile to ~1/5 of VMEM
    # (~12 MiB on v7x's 64 MiB, ~25 MiB on v5e/v6e's 128 MiB).
    x_tile_budget = max(vmem_cap // 5, 8 * 1024 * 1024)
    cap = 8192
    while cap > 128 and 2 * cap * d_in * 4 > x_tile_budget:
        cap //= 2

    # Start from "half the batch" so there are >= 2 tiles whenever possible.
    bt = min(cap, _round_up(pl.cdiv(batch, 2), 128))
    n = pl.cdiv(batch, bt)
    if n >= 3 and n % 2 == 1:
        # Nudge toward an even tile count (balanced across 2 TensorCores).
        bt = min(cap, _round_up(pl.cdiv(batch, n + 1), 128))
    return bt


@functools.partial(jax.jit, static_argnames=("batch_tile",))
def mlp_forward(x, params, batch_tile=None):
    """x: (B, input_size) f32. params: dict from init_params. Returns (B, 1) f32."""
    w1, b1 = params["w1"], params["b1"]
    w2, b2 = params["w2"], params["b2"]
    w3, b3 = params["w3"], params["b3"]
    w4, b4 = params["w4"], params["b4"]

    B, D_in = x.shape
    vmem_cap = _vmem_capacity_bytes()
    bt = batch_tile if batch_tile is not None else _pick_batch_tile(B, D_in, vmem_cap)
    num_tiles = pl.cdiv(B, bt)
    # Only the (tiny, 4 B/row) output is padded; x is fed unpadded and the
    # last x block is a clipped read (garbage rows flow to sliced-off lanes).
    B_out = num_tiles * bt

    # Whole-array param blocks with a constant index map are DMA'd once and
    # stay resident across grid steps.
    full = lambda arr: pl.BlockSpec(arr.shape, lambda i: (0, 0))

    # Budget-derived VMEM limit: double-buffered f32 x tile + resident weights
    # + double-buffered output + f32/bf16 intermediates, 2x headroom. No
    # clamp-up to the physical limit: capped at 3/4 of per-core VMEM
    # (~48 MiB on v7x) to leave compiler-scratch headroom.
    param_bytes = sum(int(p.size) * p.dtype.itemsize
                      for p in (w1, b1, w2, b2, w3, b3, w4, b4))
    vmem_budget = (2 * bt * D_in * 4            # x tile (f32, double-buffered)
                   + 2 * param_bytes            # weights/biases (buffered)
                   + 2 * bt * 4                 # (1, bt) f32 output
                   + bt * (128 + 64 + 32) * 4   # f32 intermediates
                   + bt * (128 + 64 + 32) * 2)  # bf16 casts feeding next matmul
    vmem_limit = int(min(max(2 * vmem_budget, 16 * 1024 * 1024),
                         (3 * vmem_cap) // 4))

    out = pl.pallas_call(
        _mlp_kernel,
        out_shape=jax.ShapeDtypeStruct((1, B_out), jnp.float32),
        grid_spec=pltpu.PrefetchScalarGridSpec(
            num_scalar_prefetch=0,
            grid=(num_tiles,),
            in_specs=[
                pl.BlockSpec((bt, D_in), lambda i: (i, 0)),   # x batch tile (f32)
                full(w1), full(b1),
                full(w2), full(b2),
                full(w3), full(b3),
                full(w4), full(b4),
            ],
            # Lane-dense output: one (1, bt) row per grid step, batch on lanes.
            out_specs=pl.BlockSpec((1, bt), lambda i: (0, i)),
        ),
        compiler_params=pltpu.CompilerParams(
            dimension_semantics=("parallel",),    # megacore shards batch tiles
            vmem_limit_bytes=vmem_limit),
    )(x, w1, b1, w2, b2, w3, b3, w4, b4)

    return out[0, :B].reshape(B, 1)


def init_params(key, input_size, compute_dtype=jnp.bfloat16):
    """PyTorch nn.Linear-style init (U[-1/sqrt(fan_in), +1/sqrt(fan_in)]).

    w1..w3 stored (in, out) in bf16 (native MXU rate); w4 stored transposed as
    (1, 32) so the kernel can emit a lane-dense (1, batch_tile) output row.
    Biases kept f32 and added post-accumulation.
    """
    dims = [(input_size, 128), (128, 64), (64, 32), (32, 1)]
    params = {}
    for idx, (fan_in, fan_out) in enumerate(dims, start=1):
        key, kw, kb = jax.random.split(key, 3)
        bound = fan_in ** -0.5
        w = jax.random.uniform(kw, (fan_in, fan_out), jnp.float32, -bound, bound)
        b = jax.random.uniform(kb, (1, fan_out), jnp.float32, -bound, bound)
        if idx == 4:
            w = w.T                         # (1, 32): (out, in) layout for NT matmul
        params[f"w{idx}"] = w.astype(compute_dtype)
        params[f"b{idx}"] = b               # f32
    return params


def reference_forward(x, params):
    """Pure-JAX reference mirroring the kernel math (bf16 MXU ops, f32 accum)."""
    cd = params["w1"].dtype
    h = jnp.dot(x.astype(cd), params["w1"],
                preferred_element_type=jnp.float32) + params["b1"]
    h = jnp.maximum(h, 0.0)
    h = jnp.dot(h.astype(cd), params["w2"],
                preferred_element_type=jnp.float32) + params["b2"]
    h = jnp.maximum(h, 0.0)
    h = jnp.dot(h.astype(cd), params["w3"],
                preferred_element_type=jnp.float32) + params["b3"]
    h = jnp.maximum(h, 0.0)
    y = jnp.dot(h.astype(cd), params["w4"].T,
                preferred_element_type=jnp.float32)
    return y + params["b4"]


if __name__ == "__main__":
    key = jax.random.PRNGKey(0)
    input_size = 32

    k_x, k_p, k_x2 = jax.random.split(key, 3)
    params = init_params(k_p, input_size)

    # Small smoke test (single tile, batch < 128 path).
    x_small = jax.random.normal(k_x, (8, input_size), jnp.float32)
    out_small = jax.block_until_ready(mlp_forward(x_small, params))
    ref_small = reference_forward(x_small, params)
    assert out_small.shape == (8, 1), out_small.shape
    assert jnp.allclose(out_small, ref_small, atol=2e-4, rtol=2e-4), (
        float(jnp.max(jnp.abs(out_small - ref_small))))

    # Non-multiple batch exercising the clipped last tile + 2-tile (megacore) path.
    x_big = jax.random.normal(k_x2, (300, input_size), jnp.float32)
    out_big = jax.block_until_ready(mlp_forward(x_big, params))
    ref_big = reference_forward(x_big, params)
    assert out_big.shape == (300, 1), out_big.shape
    assert jnp.allclose(out_big, ref_big, atol=2e-4, rtol=2e-4), (
        float(jnp.max(jnp.abs(out_big - ref_big))))

    print("KERNEL_OK")
</pallas_src>

<mosaic_0001>
module attributes {stable_mosaic.version = 11 : i64} {
  func.func @_mlp_kernel(%arg0: i32, %arg1: memref<8x32xf32, #tpu.memory_space<vmem>>, %arg2: memref<32x128xbf16, #tpu.memory_space<vmem>>, %arg3: memref<1x128xf32, #tpu.memory_space<vmem>>, %arg4: memref<128x64xbf16, #tpu.memory_space<vmem>>, %arg5: memref<1x64xf32, #tpu.memory_space<vmem>>, %arg6: memref<64x32xbf16, #tpu.memory_space<vmem>>, %arg7: memref<1x32xf32, #tpu.memory_space<vmem>>, %arg8: memref<1x32xbf16, #tpu.memory_space<vmem>>, %arg9: memref<1x1xf32, #tpu.memory_space<vmem>>, %arg10: memref<1x8xf32, #tpu.memory_space<vmem>>) attributes {dimension_semantics = [#tpu.dimension_semantics<parallel>], iteration_bounds = array<i64: 1>, scalar_prefetch = 0 : i64, scratch_operands = 0 : i64, tpu.core_type = #tpu.core_type<tc>, window_params = [{transform_indices = @transform_0, window_bounds = array<i64: 8, 32>}, {pipeline_mode = #tpu.pipeline_mode<synchronous>, transform_indices = @transform_1, window_bounds = array<i64: 32, 128>}, {pipeline_mode = #tpu.pipeline_mode<synchronous>, transform_indices = @transform_2, window_bounds = array<i64: 1, 128>}, {pipeline_mode = #tpu.pipeline_mode<synchronous>, transform_indices = @transform_3, window_bounds = array<i64: 128, 64>}, {pipeline_mode = #tpu.pipeline_mode<synchronous>, transform_indices = @transform_4, window_bounds = array<i64: 1, 64>}, {pipeline_mode = #tpu.pipeline_mode<synchronous>, transform_indices = @transform_5, window_bounds = array<i64: 64, 32>}, {pipeline_mode = #tpu.pipeline_mode<synchronous>, transform_indices = @transform_6, window_bounds = array<i64: 1, 32>}, {pipeline_mode = #tpu.pipeline_mode<synchronous>, transform_indices = @transform_7, window_bounds = array<i64: 1, 32>}, {pipeline_mode = #tpu.pipeline_mode<synchronous>, transform_indices = @transform_8, window_bounds = array<i64: 1, 1>}, {transform_indices = @transform_9, window_bounds = array<i64: 1, 8>}]} {
    %c0 = arith.constant 0 : index
    %c0_0 = arith.constant 0 : index
    %0 = vector.load %arg1[%c0, %c0_0] : memref<8x32xf32, #tpu.memory_space<vmem>>, vector<8x32xf32>
    %1 = arith.truncf %0 : vector<8x32xf32> to vector<8x32xbf16>
    %c0_1 = arith.constant 0 : index
    %c0_2 = arith.constant 0 : index
    %2 = vector.load %arg2[%c0_1, %c0_2] : memref<32x128xbf16, #tpu.memory_space<vmem>>, vector<32x128xbf16>
    %cst = arith.constant dense<0.000000e+00> : vector<8x128xf32>
    %3 = tpu.matmul %1, %2, %cst {dimension_numbers = #tpu.dot_dimension_numbers<[1], [0], [0], [1], [0, 0, 1, 1], [], []>} : vector<8x32xbf16>, vector<32x128xbf16>, vector<8x128xf32> -> vector<8x128xf32>
    %c0_3 = arith.constant 0 : index
    %c0_4 = arith.constant 0 : index
    %4 = vector.load %arg3[%c0_3, %c0_4] : memref<1x128xf32, #tpu.memory_space<vmem>>, vector<1x128xf32>
    %5 = vector.broadcast %4 : vector<1x128xf32> to vector<8x128xf32>
    %6 = arith.addf %3, %5 : vector<8x128xf32>
    %cst_5 = arith.constant 0.000000e+00 : f32
    %7 = vector.broadcast %cst_5 : f32 to vector<8x128xf32>
    %8 = arith.maximumf %6, %7 : vector<8x128xf32>
    %9 = arith.truncf %8 : vector<8x128xf32> to vector<8x128xbf16>
    %c0_6 = arith.constant 0 : index
    %c0_7 = arith.constant 0 : index
    %10 = vector.load %arg4[%c0_6, %c0_7] : memref<128x64xbf16, #tpu.memory_space<vmem>>, vector<128x64xbf16>
    %cst_8 = arith.constant dense<0.000000e+00> : vector<8x64xf32>
    %11 = tpu.matmul %9, %10, %cst_8 {dimension_numbers = #tpu.dot_dimension_numbers<[1], [0], [0], [1], [0, 0, 1, 1], [], []>} : vector<8x128xbf16>, vector<128x64xbf16>, vector<8x64xf32> -> vector<8x64xf32>
    %c0_9 = arith.constant 0 : index
    %c0_10 = arith.constant 0 : index
    %12 = vector.load %arg5[%c0_9, %c0_10] : memref<1x64xf32, #tpu.memory_space<vmem>>, vector<1x64xf32>
    %13 = vector.broadcast %12 : vector<1x64xf32> to vector<8x64xf32>
    %14 = arith.addf %11, %13 : vector<8x64xf32>
    %cst_11 = arith.constant 0.000000e+00 : f32
    %15 = vector.broadcast %cst_11 : f32 to vector<8x64xf32>
    %16 = arith.maximumf %14, %15 : vector<8x64xf32>
    %17 = arith.truncf %16 : vector<8x64xf32> to vector<8x64xbf16>
    %c0_12 = arith.constant 0 : index
    %c0_13 = arith.constant 0 : index
    %18 = vector.load %arg6[%c0_12, %c0_13] : memref<64x32xbf16, #tpu.memory_space<vmem>>, vector<64x32xbf16>
    %cst_14 = arith.constant dense<0.000000e+00> : vector<8x32xf32>
    %19 = tpu.matmul %17, %18, %cst_14 {dimension_numbers = #tpu.dot_dimension_numbers<[1], [0], [0], [1], [0, 0, 1, 1], [], []>} : vector<8x64xbf16>, vector<64x32xbf16>, vector<8x32xf32> -> vector<8x32xf32>
    %c0_15 = arith.constant 0 : index
    %c0_16 = arith.constant 0 : index
    %20 = vector.load %arg7[%c0_15, %c0_16] : memref<1x32xf32, #tpu.memory_space<vmem>>, vector<1x32xf32>
    %21 = vector.broadcast %20 : vector<1x32xf32> to vector<8x32xf32>
    %22 = arith.addf %19, %21 : vector<8x32xf32>
    %cst_17 = arith.constant 0.000000e+00 : f32
    %23 = vector.broadcast %cst_17 : f32 to vector<8x32xf32>
    %24 = arith.maximumf %22, %23 : vector<8x32xf32>
    %c0_18 = arith.constant 0 : index
    %c0_19 = arith.constant 0 : index
    %25 = vector.load %arg8[%c0_18, %c0_19] : memref<1x32xbf16, #tpu.memory_space<vmem>>, vector<1x32xbf16>
    %26 = arith.truncf %24 : vector<8x32xf32> to vector<8x32xbf16>
    %cst_20 = arith.constant dense<0.000000e+00> : vector<1x8xf32>
    %27 = tpu.matmul %25, %26, %cst_20 {dimension_numbers = #tpu.dot_dimension_numbers<[1], [1], [0], [0], [0, 0, 1, 0], [], []>} : vector<1x32xbf16>, vector<8x32xbf16>, vector<1x8xf32> -> vector<1x8xf32>
    %c0_21 = arith.constant 0 : index
    %c0_22 = arith.constant 0 : index
    %28 = vector.load %arg9[%c0_21, %c0_22] : memref<1x1xf32, #tpu.memory_space<vmem>>, vector<1x1xf32>
    %29 = vector.broadcast %28 : vector<1x1xf32> to vector<1x8xf32>
    %30 = arith.addf %27, %29 : vector<1x8xf32>
    %c0_23 = arith.constant 0 : index
    %c0_24 = arith.constant 0 : index
    %31 = vector.load %arg10[%c0_23, %c0_24] : memref<1x8xf32, #tpu.memory_space<vmem>>, vector<1x8xf32>
    tpu.vector_store %arg10[%c0_23, %c0_24], %30 {strides = array<i32>} : memref<1x8xf32, #tpu.memory_space<vmem>>, vector<1x8xf32>,
    return
  }
  func.func @transform_0(%arg0: i32) -> (i32, i32) {
    %c0_i32 = arith.constant 0 : i32
    %c0_i32_0 = arith.constant 0 : i32
    return %arg0, %c0_i32 : i32, i32
  }
  func.func @transform_1(%arg0: i32) -> (i32, i32) {
    %c0_i32 = arith.constant 0 : i32
    %c0_i32_0 = arith.constant 0 : i32
    %c0_i32_1 = arith.constant 0 : i32
    return %c0_i32, %c0_i32_0 : i32, i32
  }
  func.func @transform_2(%arg0: i32) -> (i32, i32) {
    %c0_i32 = arith.constant 0 : i32
    %c0_i32_0 = arith.constant 0 : i32
    %c0_i32_1 = arith.constant 0 : i32
    return %c0_i32, %c0_i32_0 : i32, i32
  }
  func.func @transform_3(%arg0: i32) -> (i32, i32) {
    %c0_i32 = arith.constant 0 : i32
    %c0_i32_0 = arith.constant 0 : i32
    %c0_i32_1 = arith.constant 0 : i32
    return %c0_i32, %c0_i32_0 : i32, i32
  }
  func.func @transform_4(%arg0: i32) -> (i32, i32) {
    %c0_i32 = arith.constant 0 : i32
    %c0_i32_0 = arith.constant 0 : i32
    %c0_i32_1 = arith.constant 0 : i32
    return %c0_i32, %c0_i32_0 : i32, i32
  }
  func.func @transform_5(%arg0: i32) -> (i32, i32) {
    %c0_i32 = arith.constant 0 : i32
    %c0_i32_0 = arith.constant 0 : i32
    %c0_i32_1 = arith.constant 0 : i32
    return %c0_i32, %c0_i32_0 : i32, i32
  }
  func.func @transform_6(%arg0: i32) -> (i32, i32) {
    %c0_i32 = arith.constant 0 : i32
    %c0_i32_0 = arith.constant 0 : i32
    %c0_i32_1 = arith.constant 0 : i32
    return %c0_i32, %c0_i32_0 : i32, i32
  }
  func.func @transform_7(%arg0: i32) -> (i32, i32) {
    %c0_i32 = arith.constant 0 : i32
    %c0_i32_0 = arith.constant 0 : i32
    %c0_i32_1 = arith.constant 0 : i32
    return %c0_i32, %c0_i32_0 : i32, i32
  }
  func.func @transform_8(%arg0: i32) -> (i32, i32) {
    %c0_i32 = arith.constant 0 : i32
    %c0_i32_0 = arith.constant 0 : i32
    %c0_i32_1 = arith.constant 0 : i32
    return %c0_i32, %c0_i32_0 : i32, i32
  }
  func.func @transform_9(%arg0: i32) -> (i32, i32) {
    %c0_i32 = arith.constant 0 : i32
    %c0_i32_0 = arith.constant 0 : i32
    return %c0_i32, %arg0 : i32, i32
  }
}

</mosaic_0001>

<llo_original>
// kernel: mlp_forward.1
$region0: #{mlp_forward.1}
  #allocation0 [shape = 'u32[]', space=smem, size = 0x4, offset = 0x4, fixed_abs, tag = 'smem constant byte address 0x4 - core index']
  #allocation1 [shape = 'u32[72,128]{1,0:T(1,128)}', space=vmem, size = 0x9000, scoped, tag = 'internal scratch']
  #allocation2 [shape = 'f32[1,1]{1,0:T(1,128)S(1)}', space=vmem, size = 0x200, scoped, tag = 'scoped memory for mlp_forward.1']
  %s0 = inlined_call_operand.vmem [shape: f32[8,32], index: 0, kind: input, shape index: {}]
  %s1 = inlined_call_operand.vmem [shape: bf16[32,128], index: 1, kind: input, shape index: {}]
  %s2 = inlined_call_operand.vmem [shape: f32[1,128], index: 2, kind: input, shape index: {}]
  %s3 = inlined_call_operand.vmem [shape: bf16[128,64], index: 3, kind: input, shape index: {}]
  %s4 = inlined_call_operand.vmem [shape: f32[1,64], index: 4, kind: input, shape index: {}]
  %s5 = inlined_call_operand.vmem [shape: bf16[64,32], index: 5, kind: input, shape index: {}]
  %s6 = inlined_call_operand.vmem [shape: f32[1,32], index: 6, kind: input, shape index: {}]
  %s7 = inlined_call_operand.vmem [shape: bf16[1,32], index: 7, kind: input, shape index: {}]
  %s8 = inlined_call_operand.<no memory space> [shape: f32[1,1], index: 8, kind: input, shape index: {}]
  %s9 = inlined_call_operand.hbm [shape: f32[1,8], index: 9, kind: output, shape index: {}]
  %s10 = sld [smem:[#allocation0]]
  $region46: #{mlp_forward.1} parent=0
    _
  %s12 = ssub.s32 1, %s10
  %s13 = scalar_select 0, %s12, %s10
  %v14 = vstv %s8
  %15 = vst [vmem:[#allocation2] sm:$0x1] %v14
  $region1: #{mlp_forward.1} parent=0
    #allocation3 [shape = 'u8[512]{0}', space=vmem, size = 0x400, scoped, tag = 'output window, operand 0, single buffered']
    #allocation4 [shape = 's32[1]{0}', space=sflag, size = 0x4, scoped, tag = 'scoped memory for mlp_forward.1']
    %16 = vsyncpa [#allocation4], 0
    // Predicated region
    $region2: #{mlp_forward.1} parent=1 // pred_check
      _
    $region3: #{mlp_forward.1} parent=1 // pred_check_branch
      %18 = sbr.rel (0) target = $region5
    $region4: #{mlp_forward.1} parent=1 // pred_region
      _
    $region5: #{mlp_forward.1} parent=1 // pred_fallthru
      _
    // Predicated region
    $region6: #{mlp_forward.1} parent=1 // pred_check
      _
    $region7: #{mlp_forward.1} parent=1 // pred_check_branch
      %20 = sbr.rel (0) target = $region9
    $region8: #{mlp_forward.1} parent=1 // pred_region
      _
    $region9: #{mlp_forward.1} parent=1 // pred_fallthru
      _
    // Predicated region
    $region10: #{mlp_forward.1} parent=1 // pred_check
      _
    $region11: #{mlp_forward.1} parent=1 // pred_check_branch
      %22 = sbr.rel (0) target = $region13
    $region12: #{mlp_forward.1} parent=1 // pred_region
      _
    $region13: #{mlp_forward.1} parent=1 // pred_fallthru
      _
    // Predicated region
    $region14: #{mlp_forward.1} parent=1 // pred_check
      _
    $region15: #{mlp_forward.1} parent=1 // pred_check_branch
      %24 = sbr.rel (0) target = $region17
    $region16: #{mlp_forward.1} parent=1 // pred_region
      _
    $region17: #{mlp_forward.1} parent=1 // pred_fallthru
      _
    // Predicated region
    $region18: #{mlp_forward.1} parent=1 // pred_check
      _
    $region19: #{mlp_forward.1} parent=1 // pred_check_branch
      %26 = sbr.rel (0) target = $region21
    $region20: #{mlp_forward.1} parent=1 // pred_region
      _
    $region21: #{mlp_forward.1} parent=1 // pred_fallthru
      _
    // Predicated region
    $region22: #{mlp_forward.1} parent=1 // pred_check
      _
    $region23: #{mlp_forward.1} parent=1 // pred_check_branch
      %28 = sbr.rel (0) target = $region25
    $region24: #{mlp_forward.1} parent=1 // pred_region
      _
    $region25: #{mlp_forward.1} parent=1 // pred_fallthru
      _
    // Predicated region
    $region26: #{mlp_forward.1} parent=1 // pred_check
      _
    $region27: #{mlp_forward.1} parent=1 // pred_check_branch
      %30 = sbr.rel (0) target = $region29
    $region28: #{mlp_forward.1} parent=1 // pred_region
      _
    $region29: #{mlp_forward.1} parent=1 // pred_fallthru
      _
    // Predicated region
    $region30: #{mlp_forward.1} parent=1 // pred_check
      _
    $region31: #{mlp_forward.1} parent=1 // pred_check_branch
      %32 = sbr.rel (0) target = $region33
    $region32: #{mlp_forward.1} parent=1 // pred_region
      _
    $region33: #{mlp_forward.1} parent=1 // pred_fallthru
      _
    // Predicated region
    $region34: #{mlp_forward.1} parent=1 // pred_check
      _
    $region35: #{mlp_forward.1} parent=1 // pred_check_branch
      %34 = sbr.rel (0) target = $region37
    $region36: #{mlp_forward.1} parent=1 // pred_region
      _
    $region37: #{mlp_forward.1} parent=1 // pred_fallthru
      _
    %v36 = vld [vmem:[%s0] sm:$0xff]
    %v37 = vpack.c.bf16 %v36, %v36
    %v38 = vld [vmem:[%s1] sm:$0xf]
    %v39 = vld [vmem:[%s1 + $0x4] sm:$0xf]
    %v40 = vld [vmem:[%s1 + $0x8] sm:$0xf]
    %v41 = vld [vmem:[%s1 + $0xc] sm:$0xf]
    %v42 = vld [vmem:[%s2] sm:$0x1]
    %v44 = vperm.slane %v42, 0
    %v50 = vunpack.c.l.b16 %v38
    %v51 = vunpack.c.l.b16 %v39
    %v52 = vunpack.c.l.b16 %v40
    %v53 = vunpack.c.l.b16 %v41
    %v54 = vpack.c.b16 %v51, %v50
    %v55 = vpack.c.b16 %v53, %v52
    %vm58 = vcmask 261120
    %v60 = vsel %vm58, %v37, 0
    %62 = vmatpush.bf16.msra.mxu0 0
    %63 = vmatpush.bf16.msra.mxu0 0
    %64 = vmatpush.bf16.msra.mxu0 0
    %65 = vmatpush.bf16.msra.mxu0 0
    %66 = vmatpush.bf16.msra.mxu0 0
    %67 = vmatpush.bf16.msra.mxu0 0
    %68 = vmatpush.bf16.msra.mxu0 %v55
    %69 = vmatpush.bf16.msra.mxu0 %v54
    %70 = vmatmul.bf16.gmra.mxu0 %v60
    %v71 = vpop.f32.mrf.mxu0
    %v72 = vadd.f32 %v44, %v71
    %v73 = vpop.f32.mrf.mxu0
    %74 = vdwg.mxu0
    %v75 = vmax.f32 %v72, 0.0
    %v76 = vpack.c.bf16 %v75, %v75
    %v77 = vld [vmem:[%s3] sm:$0xf]
    %v78 = vld [vmem:[%s3 + $0x4] sm:$0xf]
    %v79 = vld [vmem:[%s3 + $0x8] sm:$0xf]
    %v80 = vld [vmem:[%s3 + $0xc] sm:$0xf]
    %v81 = vld [vmem:[%s3 + $0x10] sm:$0xf]
    %v82 = vld [vmem:[%s3 + $0x14] sm:$0xf]
    %v83 = vld [vmem:[%s3 + $0x18] sm:$0xf]
    %v84 = vld [vmem:[%s3 + $0x1c] sm:$0xf]
    %v85 = vld [vmem:[%s3 + $0x20] sm:$0xf]
    %v86 = vld [vmem:[%s3 + $0x24] sm:$0xf]
    %v87 = vld [vmem:[%s3 + $0x28] sm:$0xf]
    %v88 = vld [vmem:[%s3 + $0x2c] sm:$0xf]
    %v89 = vld [vmem:[%s3 + $0x30] sm:$0xf]
    %v90 = vld [vmem:[%s3 + $0x34] sm:$0xf]
    %v91 = vld [vmem:[%s3 + $0x38] sm:$0xf]
    %v92 = vld [vmem:[%s3 + $0x3c] sm:$0xf]
    %v93 = vld [vmem:[%s4] sm:$0x1]
    %v95 = vperm.slane %v93, 0
    %v113 = vunpack.c.l.b16 %v77
    %v114 = vunpack.c.l.b16 %v78
    %v115 = vunpack.c.l.b16 %v79
    %v116 = vunpack.c.l.b16 %v80
    %v117 = vunpack.c.l.b16 %v81
    %v118 = vunpack.c.l.b16 %v82
    %v119 = vunpack.c.l.b16 %v83
    %v120 = vunpack.c.l.b16 %v84
    %v121 = vunpack.c.l.b16 %v85
    %v122 = vunpack.c.l.b16 %v86
    %v123 = vunpack.c.l.b16 %v87
    %v124 = vunpack.c.l.b16 %v88
    %v125 = vunpack.c.l.b16 %v89
    %v126 = vunpack.c.l.b16 %v90
    %v127 = vunpack.c.l.b16 %v91
    %v128 = vunpack.c.l.b16 %v92
    %v129 = vpack.c.b16 %v114, %v113
    %v130 = vpack.c.b16 %v116, %v115
    %v131 = vpack.c.b16 %v118, %v117
    %v132 = vpack.c.b16 %v120, %v119
    %v133 = vpack.c.b16 %v122, %v121
    %v134 = vpack.c.b16 %v124, %v123
    %v135 = vpack.c.b16 %v126, %v125
    %v136 = vpack.c.b16 %v128, %v127
    %145 = vmatpush.bf16.msra.mxu0 %v136
    %146 = vmatpush.bf16.msra.mxu0 %v135
    %147 = vmatpush.bf16.msra.mxu0 %v134
    %148 = vmatpush.bf16.msra.mxu0 %v133
    %149 = vmatpush.bf16.msra.mxu0 %v132
    %150 = vmatpush.bf16.msra.mxu0 %v131
    %151 = vmatpush.bf16.msra.mxu0 %v130
    %152 = vmatpush.bf16.msra.mxu0 %v129
    %153 = vmatmul.bf16.gmra.mxu0 %v76
    %v154 = vpop.f32.mrf.mxu0
    %v155 = vadd.f32 %v95, %v154
    %v156 = vpop.f32.mrf.mxu0
    %157 = vdwg.mxu0
    %v158 = vmax.f32 %v155, 0.0
    %v159 = vpack.c.bf16 %v158, %v158
    %v160 = vld [vmem:[%s5] sm:$0xf]
    %v161 = vld [vmem:[%s5 + $0x4] sm:$0xf]
    %v162 = vld [vmem:[%s5 + $0x8] sm:$0xf]
    %v163 = vld [vmem:[%s5 + $0xc] sm:$0xf]
    %v164 = vld [vmem:[%s5 + $0x10] sm:$0xf]
    %v165 = vld [vmem:[%s5 + $0x14] sm:$0xf]
    %v166 = vld [vmem:[%s5 + $0x18] sm:$0xf]
    %v167 = vld [vmem:[%s5 + $0x1c] sm:$0xf]
    %v168 = vld [vmem:[%s6] sm:$0x1]
    %v170 = vperm.slane %v168, 0
    %v180 = vunpack.c.l.b16 %v160
    %v181 = vunpack.c.l.b16 %v161
    %v182 = vunpack.c.l.b16 %v162
    %v183 = vunpack.c.l.b16 %v163
    %v184 = vunpack.c.l.b16 %v164
    %v185 = vunpack.c.l.b16 %v165
    %v186 = vunpack.c.l.b16 %v166
    %v187 = vunpack.c.l.b16 %v167
    %v188 = vpack.c.b16 %v181, %v180
    %v189 = vpack.c.b16 %v183, %v182
    %v190 = vpack.c.b16 %v185, %v184
    %v191 = vpack.c.b16 %v187, %v186
    %vm196 = vcmask 523264
    %v198 = vsel %vm196, %v159, 0
    %200 = vmatpush.bf16.msra.mxu0 0
    %201 = vmatpush.bf16.msra.mxu0 0
    %202 = vmatpush.bf16.msra.mxu0 0
    %203 = vmatpush.bf16.msra.mxu0 0
    %204 = vmatpush.bf16.msra.mxu0 %v191
    %205 = vmatpush.bf16.msra.mxu0 %v190
    %206 = vmatpush.bf16.msra.mxu0 %v189
    %207 = vmatpush.bf16.msra.mxu0 %v188
    %208 = vmatmul.bf16.gmra.mxu0 %v198
    %v209 = vpop.f32.mrf.mxu0
    %v210 = vadd.f32 %v170, %v209
    %v211 = vpop.f32.mrf.mxu0
    %212 = vdwg.mxu0
    %v213 = vmax.f32 %v210, 0.0
    %v214 = vld [vmem:[%s7] sm:$0x1]
    %v215 = vpack.c.bf16 %v213, %v213
    %v216 = vld [vmem:[#allocation2] sm:$0x1]
    %218 = vset.pattern.permute.xlu0 0
    %219 = vperm.xlu0 %218, %v216
    %v220 = vpop.permute.xlu0 %219
    %v222 = vperm.slane %v220, 0
    %v224 = vsel %vm58, %v214, 0
    %v227 = vsel %vm58, %v215, 0
    %229 = vmatpush.bf16.xpose.msra.mxu0 0
    %230 = vmatpush.bf16.xpose.msra.mxu0 0
    %231 = vmatpush.bf16.xpose.msra.mxu0 0
    %232 = vmatpush.bf16.xpose.msra.mxu0 0
    %233 = vmatpush.bf16.xpose.msra.mxu0 0
    %234 = vmatpush.bf16.xpose.msra.mxu0 0
    %235 = vmatpush.bf16.xpose.msra.mxu0 0
    %236 = vmatpush.bf16.xpose.msra.mxu0 %v227
    %237 = vmatmul.bf16.gmra.mxu0 %v224
    %v238 = vpop.f32.mrf.mxu0
    %v239 = vadd.f32 %v222, %v238
    %v240 = vpop.f32.mrf.mxu0
    %241 = vdwg.mxu0
    %vm242 = vcmask 57344
    %243 = vst.msk [vmem:[#allocation3] sm:$0x1] %vm242, %v239
    // Predicated region
    $region38: #{mlp_forward.1} parent=1 // pred_check
      _
    $region39: #{mlp_forward.1} parent=1 // pred_check_branch
      %245 = sbr.rel (0) target = $region41
    $region40: #{mlp_forward.1} parent=1 // pred_region
      %247 = vsyncadd [#allocation4], 0
      %s249 = sshll.u32 [#allocation3], 4
      %s250 = int_to_ptr.vmem [resolvable:$true] %s249
      %s251 = sshll.u32 %s9, 4
      %s252 = int_to_ptr.hbm [resolvable:$true] %s251
      %254 = dma.vmem_to_hbm [thread:$0]  %s250, 16, %s252, [#allocation4]
    $region41: #{mlp_forward.1} parent=1 // pred_fallthru
      _
    // Predicated region
    $region42: #{mlp_forward.1} parent=1 // pred_check
      _
    $region43: #{mlp_forward.1} parent=1 // pred_check_branch
      %256 = sbr.rel (0) target = $region45
    $region44: #{mlp_forward.1} parent=1 // pred_region
      %258 = dma.done [#allocation4], 16
    $region45: #{mlp_forward.1} parent=1 // pred_fallthru
      _
    %259 = vsyncpa [#allocation4], 1

</llo_original>
